<compile_context>
chip_gen: v7x
topology: tpu7x:2x2x1
jax: 0.10.0
libtpu: 0.0.40
codegen_flags: <defaults>
</compile_context>

<pallas_src>
import functools

import jax
import jax.numpy as jnp
from jax import lax
from jax.experimental import pallas as pl
from jax.experimental.pallas import tpu as pltpu

_LANE = 128
_SUBLANE = 8
_CHUNK_F32_BYTES = 1 << 20      # target size of one in-kernel f32 compute chunk
_MAX_TILE_BYTES = 32 << 20      # cap for a single x-tile DMA


def _round_up(x, m):
    return ((x + m - 1) // m) * m


def _is_pow2(n):
    return n >= 1 and (n & (n - 1)) == 0


def _vmem_capacity_bytes():
    # Generation-aware VMEM capacity (v5e/v6e: 128 MiB, v7x: 64 MiB per TC).
    try:
        return int(pltpu.get_tpu_info().vmem_capacity_bytes)
    except Exception:
        return 64 << 20  # conservative (v7x-safe) fallback


def _choose_batch_tile(B, row_vmem_bytes, fixed_bytes, sc, vmem_budget):
    """Rows of x per grid step: as large as the VMEM budget allows."""
    avail = max(vmem_budget - fixed_bytes, 2 * row_vmem_bytes)
    tb = int(avail // (2 * row_vmem_bytes))           # x + out, double-buffered
    tb = min(tb, max(1, _MAX_TILE_BYTES // row_vmem_bytes))
    tb = max(min(tb, B), sc)
    if tb >= B:
        tb = B
        # v7x megacore: keep >= 2 grid steps when the batch is large enough so
        # both TensorCores get work under dimension_semantics="parallel".
        if B >= 16 and B >= 2 * sc:
            half = _round_up((B + 1) // 2, _SUBLANE)
            if half < B:
                tb = half
    if tb < B:
        # (8, 128) rule: the sublane dim of a 2D block must be a multiple of 8
        # unless it spans the full array.
        tb = max(_SUBLANE, (tb // _SUBLANE) * _SUBLANE)
        tb = min(tb, B)
    return tb


def _affine_lane_dense_kernel(w_ref, b_ref, x_ref, o_ref, *, out_size, sc):
    """Lane-dense path: x block (TB, I*O), W pre-expanded to (1, I*O).

    Requires I to be a power of two (checked in the wrapper).
    """
    tb, flat = x_ref.shape
    nsub = (tb + sc - 1) // sc
    last = tb - sc
    # Hoist the sublane broadcast of W out of the chunk loop (JAX does not CSE
    # broadcast_in_dim inside loops).
    wb = jnp.broadcast_to(w_ref[...].astype(jnp.float32), (sc, flat))
    bias = b_ref[...].astype(jnp.float32)                      # (1, O)

    def chunk(c, carry):
        r0 = jnp.minimum(c * sc, last)     # clamp: overlap instead of a ragged tail
        p = x_ref[pl.ds(r0, sc), :].astype(jnp.float32) * wb   # (sc, flat) f32
        # Reduce the I lane-chunks of width O down to one chunk:
        #  (a) lane-aligned halving adds (pure VPU, no relayout) while the
        #      half is still a multiple of 128 lanes,
        cur = flat
        while cur > out_size and (cur // 2) % _LANE == 0:
            half = cur // 2
            p = p[:, :half] + p[:, half:cur]
            cur = half
        #  (b) a log2 tree of cheap single-tile XLU lane rotations for the
        #      remaining sub-128-lane tail (valid: #chunks is a power of two).
        p = p[:, :cur]
        shift = out_size
        while shift < cur:
            p = p + pltpu.roll(p, shift, axis=1)
            shift *= 2
        o_ref[pl.ds(r0, sc), :] = (p[:, :out_size] + bias).astype(o_ref.dtype)
        return carry

    if nsub == 1:
        chunk(0, 0)
    else:
        lax.fori_loop(0, nsub, chunk, 0, unroll=False)


def _affine_blocked_kernel(w_ref, b_ref, x_ref, o_ref, *, sc):
    """General path: x block (TB, I, TO), W pre-broadcast to a resident (I, TO)."""
    tb = x_ref.shape[0]
    nsub = (tb + sc - 1) // sc
    last = tb - sc
    wb = jnp.broadcast_to(
        w_ref[...].astype(jnp.float32)[None], (sc,) + w_ref.shape)  # (sc, I, TO)
    bias = b_ref[...].astype(jnp.float32)                            # (1, TO)

    def chunk(c, carry):
        r0 = jnp.minimum(c * sc, last)
        xs = x_ref[pl.ds(r0, sc), :, :].astype(jnp.float32)          # (sc, I, TO)
        acc = jnp.sum(xs * wb, axis=1)                               # (sc, TO) f32
        o_ref[pl.ds(r0, sc), :] = (acc + bias).astype(o_ref.dtype)
        return carry

    if nsub == 1:
        chunk(0, 0)
    else:
        lax.fori_loop(0, nsub, chunk, 0, unroll=False)


def affine_regression(W, b, x):
    """Forward of AffineRegression: squeeze(matmul(W, x) + b, 1) -> (B, O)."""
    B, in_size, out_size = x.shape
    assert W.shape == (1, in_size)
    assert b.shape == (1, out_size)

    x_item = jnp.dtype(x.dtype).itemsize
    out_dtype = x.dtype
    out_item = jnp.dtype(out_dtype).itemsize

    capacity = _vmem_capacity_bytes()
    vmem_budget = int(0.70 * capacity)       # headroom for in-kernel temporaries
    vmem_limit = int(0.75 * capacity)

    w_col = W.reshape(in_size, 1).astype(jnp.float32)
    b_f32 = b.astype(jnp.float32)

    flat = in_size * out_size
    flat_pad = _round_up(flat, _LANE)
    lane_dense = (
        out_size < _LANE
        and _is_pow2(in_size)
        and flat_pad * 4 * _SUBLANE <= _CHUNK_F32_BYTES   # keeps sc >= 8
    )

    if lane_dense:
        # ---- fast path: lane-dense (B, I*O) blocks --------------------------
        out_pad = _round_up(out_size, _LANE)
        row_vmem = flat_pad * x_item + out_pad * out_item
        sc = max(1, _CHUNK_F32_BYTES // (flat_pad * 4))
        sc = min(sc, B)
        if sc >= _SUBLANE:
            sc = (sc // _SUBLANE) * _SUBLANE
        temps = 4 * sc * flat_pad * 4                 # wb + upcast + product + roll tmp
        fixed = flat_pad * 4 + out_pad * 4 + temps + (2 << 20)
        tb = _choose_batch_tile(B, row_vmem, fixed, sc, vmem_budget)
        sc = min(sc, tb)

        x_flat = x.reshape(B, flat)                   # free: last two axes contiguous
        w_exp = jnp.repeat(w_col, out_size, axis=1).reshape(1, flat)

        kernel = functools.partial(
            _affine_lane_dense_kernel, out_size=out_size, sc=sc)
        grid = (pl.cdiv(B, tb),)
        in_specs = [
            pl.BlockSpec((1, flat), lambda i: (0, 0)),        # W (expanded), resident
            pl.BlockSpec((1, out_size), lambda i: (0, 0)),    # b, resident
            pl.BlockSpec((tb, flat), lambda i: (i, 0)),       # x batch tile
        ]
        out_specs = pl.BlockSpec((tb, out_size), lambda i: (i, 0))
        dim_sem = ("parallel",)
        operands = (w_exp, b_f32, x_flat)
    else:
        # ---- general path: (TB, I, TO) blocks on a (batch, O-tile) grid -----
        if out_size > 1024 and out_size % _LANE == 0:
            to = next(t for t in (2048, 1024, 512, 256, 128) if out_size % t == 0)
        else:
            to = out_size
        to_pad = _round_up(to, _LANE)
        row_vmem = in_size * to_pad * x_item + to_pad * out_item
        sc = max(1, _CHUNK_F32_BYTES // (in_size * to_pad * 4))
        sc = min(sc, B)
        if sc >= _SUBLANE:
            sc = (sc // _SUBLANE) * _SUBLANE
        temps = 4 * sc * in_size * to_pad * 4
        fixed = in_size * to_pad * 4 + to_pad * 4 + temps + (2 << 20)
        tb = _choose_batch_tile(B, row_vmem, fixed, sc, vmem_budget)
        sc = min(sc, tb)

        w_bcast = jnp.broadcast_to(w_col, (in_size, out_size))

        kernel = functools.partial(_affine_blocked_kernel, sc=sc)
        grid = (pl.cdiv(B, tb), out_size // to)
        in_specs = [
            pl.BlockSpec((in_size, to), lambda i, j: (0, j)),       # W, resident per O tile
            pl.BlockSpec((1, to), lambda i, j: (0, j)),             # b
            pl.BlockSpec((tb, in_size, to), lambda i, j: (i, 0, j)),
        ]
        out_specs = pl.BlockSpec((tb, to), lambda i, j: (i, j))
        dim_sem = ("parallel", "parallel")
        operands = (w_bcast, b_f32, x)

    cost = pl.CostEstimate(
        flops=2 * B * in_size * out_size,
        transcendentals=0,
        bytes_accessed=B * flat * x_item + B * out_size * out_item
        + (in_size + out_size) * 4,
    )

    return pl.pallas_call(
        kernel,
        out_shape=jax.ShapeDtypeStruct((B, out_size), out_dtype),
        grid_spec=pltpu.PrefetchScalarGridSpec(
            num_scalar_prefetch=0,
            grid=grid,
            in_specs=in_specs,
            out_specs=out_specs,
        ),
        compiler_params=pltpu.CompilerParams(
            dimension_semantics=dim_sem,
            vmem_limit_bytes=vmem_limit,
        ),
        cost_estimate=cost,
    )(*operands)


def _reference(W, b, x):
    # Pure-f32 elementwise reference with the same semantics as the module's
    # torch.matmul(W, x) + b (squeezed); avoids matmul-precision ambiguity.
    return jnp.sum(W.reshape(1, W.shape[1], 1) * x, axis=1) + b


if __name__ == "__main__":
    key = jax.random.PRNGKey(0)

    def check(batch, in_size, out_size, k):
        kW, kb, kx = jax.random.split(k, 3)
        W = jax.random.normal(kW, (1, in_size), dtype=jnp.float32)
        b = jax.random.normal(kb, (1, out_size), dtype=jnp.float32)
        x = jax.random.normal(kx, (batch, in_size, out_size), dtype=jnp.float32)
        out = affine_regression(W, b, x)
        jax.block_until_ready(out)
        ref = _reference(W, b, x)
        assert out.shape == (batch, out_size), out.shape
        err = float(jnp.max(jnp.abs(out - ref)))
        assert jnp.allclose(out, ref, atol=1e-5, rtol=1e-5), err
        return out

    k1, k2, k3 = jax.random.split(key, 3)
    # Small shape matching the module (lane-dense fast path).
    check(2, 16, 32, k1)
    # Larger batch: exercises in-kernel chunking with a clamped/overlapping chunk.
    check(20, 16, 32, k2)
    # General fallback path (I not a power of two, O >= 128).
    check(3, 5, 160, k3)

    print("KERNEL_OK")
</pallas_src>

<mosaic_0001>
module attributes {stable_mosaic.version = 11 : i64} {
  func.func @_affine_lane_dense_kernel(%arg0: i32, %arg1: memref<1x512xf32, #tpu.memory_space<vmem>>, %arg2: memref<1x32xf32, #tpu.memory_space<vmem>>, %arg3: memref<2x512xf32, #tpu.memory_space<vmem>>, %arg4: memref<2x32xf32, #tpu.memory_space<vmem>>) attributes {dimension_semantics = [#tpu.dimension_semantics<parallel>], iteration_bounds = array<i64: 1>, scalar_prefetch = 0 : i64, scratch_operands = 0 : i64, tpu.core_type = #tpu.core_type<tc>, window_params = [{pipeline_mode = #tpu.pipeline_mode<synchronous>, transform_indices = @transform_0, window_bounds = array<i64: 1, 512>}, {pipeline_mode = #tpu.pipeline_mode<synchronous>, transform_indices = @transform_1, window_bounds = array<i64: 1, 32>}, {transform_indices = @transform_2, window_bounds = array<i64: 2, 512>}, {transform_indices = @transform_3, window_bounds = array<i64: 2, 32>}]} {
    %c0 = arith.constant 0 : index
    %c0_0 = arith.constant 0 : index
    %0 = vector.load %arg1[%c0, %c0_0] : memref<1x512xf32, #tpu.memory_space<vmem>>, vector<1x512xf32>
    %1 = vector.shape_cast %0 : vector<1x512xf32> to vector<1x512xf32>
    %2 = vector.broadcast %1 : vector<1x512xf32> to vector<2x512xf32>
    %c0_1 = arith.constant 0 : index
    %c0_2 = arith.constant 0 : index
    %3 = vector.load %arg2[%c0_1, %c0_2] : memref<1x32xf32, #tpu.memory_space<vmem>>, vector<1x32xf32>
    %c0_i32 = arith.constant 0 : i32
    %c0_i32_3 = arith.constant 0 : i32
    %4 = arith.minsi %c0_i32, %c0_i32_3 : i32
    %5 = arith.index_cast %4 : i32 to index
    %c0_4 = arith.constant 0 : index
    %6 = vector.load %arg3[%5, %c0_4] : memref<2x512xf32, #tpu.memory_space<vmem>>, vector<2x512xf32>
    %7 = arith.mulf %6, %2 : vector<2x512xf32>
    %8 = vector.extract_strided_slice %7 {offsets = [0, 0], sizes = [2, 256], strides = [1, 1]} : vector<2x512xf32> to vector<2x256xf32>
    %9 = vector.extract_strided_slice %7 {offsets = [0, 256], sizes = [2, 256], strides = [1, 1]} : vector<2x512xf32> to vector<2x256xf32>
    %10 = arith.addf %8, %9 : vector<2x256xf32>
    %11 = vector.extract_strided_slice %10 {offsets = [0, 0], sizes = [2, 128], strides = [1, 1]} : vector<2x256xf32> to vector<2x128xf32>
    %12 = vector.extract_strided_slice %10 {offsets = [0, 128], sizes = [2, 128], strides = [1, 1]} : vector<2x256xf32> to vector<2x128xf32>
    %13 = arith.addf %11, %12 : vector<2x128xf32>
    %c32_i32 = arith.constant 32 : i32
    %14 = tpu.dynamic_rotate %13 by %c32_i32 dim 1 : vector<2x128xf32>, i32 -> vector<2x128xf32>
    %15 = arith.addf %13, %14 : vector<2x128xf32>
    %c64_i32 = arith.constant 64 : i32
    %16 = tpu.dynamic_rotate %15 by %c64_i32 dim 1 : vector<2x128xf32>, i32 -> vector<2x128xf32>
    %17 = arith.addf %15, %16 : vector<2x128xf32>
    %18 = vector.extract_strided_slice %17 {offsets = [0, 0], sizes = [2, 32], strides = [1, 1]} : vector<2x128xf32> to vector<2x32xf32>
    %19 = vector.broadcast %3 : vector<1x32xf32> to vector<2x32xf32>
    %20 = arith.addf %18, %19 : vector<2x32xf32>
    %21 = arith.index_cast %4 : i32 to index
    %c0_5 = arith.constant 0 : index
    %22 = vector.load %arg4[%21, %c0_5] : memref<2x32xf32, #tpu.memory_space<vmem>>, vector<2x32xf32>
    tpu.vector_store %arg4[%21, %c0_5], %20 {strides = array<i32>} : memref<2x32xf32, #tpu.memory_space<vmem>>, vector<2x32xf32>,
    return
  }
  func.func @transform_0(%arg0: i32) -> (i32, i32) {
    %c0_i32 = arith.constant 0 : i32
    %c0_i32_0 = arith.constant 0 : i32
    %c0_i32_1 = arith.constant 0 : i32
    return %c0_i32, %c0_i32_0 : i32, i32
  }
  func.func @transform_1(%arg0: i32) -> (i32, i32) {
    %c0_i32 = arith.constant 0 : i32
    %c0_i32_0 = arith.constant 0 : i32
    %c0_i32_1 = arith.constant 0 : i32
    return %c0_i32, %c0_i32_0 : i32, i32
  }
  func.func @transform_2(%arg0: i32) -> (i32, i32) {
    %c0_i32 = arith.constant 0 : i32
    %c0_i32_0 = arith.constant 0 : i32
    return %arg0, %c0_i32 : i32, i32
  }
  func.func @transform_3(%arg0: i32) -> (i32, i32) {
    %c0_i32 = arith.constant 0 : i32
    %c0_i32_0 = arith.constant 0 : i32
    return %arg0, %c0_i32 : i32, i32
  }
}

</mosaic_0001>

<llo_original>
// kernel: tpu_custom_call.1
$region0: #{tpu_custom_call.1}
  #allocation0 [shape = 'u32[]', space=smem, size = 0x4, offset = 0x4, fixed_abs, tag = 'smem constant byte address 0x4 - core index']
  #allocation1 [shape = 'u32[144,128]{1,0:T(1,128)}', space=vmem, size = 0x12000, scoped, tag = 'internal scratch']
  %s0 = inlined_call_operand.hbm [shape: f32[1,512], index: 0, kind: input, shape index: {}]
  %s1 = inlined_call_operand.vmem [shape: f32[1,32], index: 1, kind: input, shape index: {}]
  %s2 = inlined_call_operand.hbm [shape: f32[2,512], index: 2, kind: input, shape index: {}]
  %s3 = inlined_call_operand.hbm [shape: f32[2,32], index: 3, kind: output, shape index: {}]
  %s4 = sld [smem:[#allocation0]]
  $region30: #{tpu_custom_call.1} parent=0
    _
  %s6 = ssub.s32 1, %s4
  %s7 = scalar_select 0, %s6, %s4
  $region1: #{tpu_custom_call.1} parent=0
    #allocation2 [shape = 'u8[2048]{0}', space=vmem, size = 0x800, scoped, tag = 'input window, operand 0, single buffered']
    #allocation3 [shape = 's32[1]{0}', space=sflag, size = 0x4, scoped, tag = 'scoped memory for tpu_custom_call.1']
    #allocation4 [shape = 's32[1]{0}', space=sflag, size = 0x4, scoped, tag = 'scoped memory for tpu_custom_call.1']
    #allocation5 [shape = 'u8[4096]{0}', space=vmem, size = 0x1000, scoped, tag = 'input window, operand 2, single buffered']
    #allocation6 [shape = 's32[1]{0}', space=sflag, size = 0x4, scoped, tag = 'scoped memory for tpu_custom_call.1']
    #allocation7 [shape = 'u8[1024]{0}', space=vmem, size = 0x400, scoped, tag = 'output window, operand 0, single buffered']
    %8 = vsyncpa [#allocation3], 0
    %9 = vsyncpa [#allocation6], 0
    %10 = vsyncpa [#allocation4], 0
    // Predicated region
    $region2: #{tpu_custom_call.1} parent=1 // pred_check
      _
    $region3: #{tpu_custom_call.1} parent=1 // pred_check_branch
      %12 = sbr.rel (0) target = $region5
    $region4: #{tpu_custom_call.1} parent=1 // pred_region
      %s14 = ssub.s32 64, 64
      %15 = vsyncadd [#allocation3], %s14
      %s17 = sshll.u32 [#allocation2], 4
      %s18 = int_to_ptr.vmem [resolvable:$true] %s17
      %20 = dma.hbm_to_vmem [thread:$0]  %s0, 64, %s18, [#allocation3]
    $region5: #{tpu_custom_call.1} parent=1 // pred_fallthru
      _
    // Predicated region
    $region6: #{tpu_custom_call.1} parent=1 // pred_check
      _
    $region7: #{tpu_custom_call.1} parent=1 // pred_check_branch
      %22 = sbr.rel (0) target = $region9
    $region8: #{tpu_custom_call.1} parent=1 // pred_region
      _
    $region9: #{tpu_custom_call.1} parent=1 // pred_fallthru
      _
    // Predicated region
    $region10: #{tpu_custom_call.1} parent=1 // pred_check
      _
    $region11: #{tpu_custom_call.1} parent=1 // pred_check_branch
      %24 = sbr.rel (0) target = $region13
    $region12: #{tpu_custom_call.1} parent=1 // pred_region
      %s26 = ssub.s32 128, 128
      %27 = vsyncadd [#allocation6], %s26
      %s29 = sshll.u32 [#allocation5], 4
      %s30 = int_to_ptr.vmem [resolvable:$true] %s29
      %32 = dma.hbm_to_vmem [thread:$0]  %s2, 128, %s30, [#allocation6]
    $region13: #{tpu_custom_call.1} parent=1 // pred_fallthru
      _
    // Predicated region
    $region14: #{tpu_custom_call.1} parent=1 // pred_check
      _
    $region15: #{tpu_custom_call.1} parent=1 // pred_check_branch
      %34 = sbr.rel (0) target = $region17
    $region16: #{tpu_custom_call.1} parent=1 // pred_region
      %35 = dma.done [#allocation3], 64
    $region17: #{tpu_custom_call.1} parent=1 // pred_fallthru
      _
    // Predicated region
    $region18: #{tpu_custom_call.1} parent=1 // pred_check
      _
    $region19: #{tpu_custom_call.1} parent=1 // pred_check_branch
      %37 = sbr.rel (0) target = $region21
    $region20: #{tpu_custom_call.1} parent=1 // pred_region
      %38 = dma.done [#allocation6], 128
    $region21: #{tpu_custom_call.1} parent=1 // pred_fallthru
      _
    %v39 = vld [vmem:[#allocation2] sm:$0xf]
    %v41 = vlaneseq
    %v42 = vshrl.u32 %v41, 7
    %v43 = vsub.s32 0, %v42
    %v44 = vrot.slane %v39, %v43
    %v45 = vlaneseq
    %v46 = vshrl.u32 %v45, 7
    %v47 = vsub.s32 1, %v46
    %v48 = vrot.slane %v39, %v47
    %v49 = vlaneseq
    %v50 = vshrl.u32 %v49, 7
    %v51 = vsub.s32 2, %v50
    %v52 = vrot.slane %v39, %v51
    %v53 = vlaneseq
    %v54 = vshrl.u32 %v53, 7
    %v55 = vsub.s32 3, %v54
    %v56 = vrot.slane %v39, %v55
    %v57 = vld [vmem:[%s1] sm:$0x1]
    %v58 = vld [vmem:[#allocation5] sm:$0xff]
    %v59 = vcombine.low %v44, %v48
    %v60 = vcombine.low %v52, %v56
    %v62 = vunpack.c.l.s4 1983009808
    %v63 = vunpack.c.0.s8 %v62
    %v64 = vlaneseq
    %v65 = vshrl.u32 %v64, 7
    %v66 = vsub.s32 %v63, %v65
    %v67 = vrot.slane %v59, %v66
    %v69 = vunpack.c.l.s4 1983009808
    %v70 = vunpack.c.0.s8 %v69
    %v71 = vlaneseq
    %v72 = vshrl.u32 %v71, 7
    %v73 = vsub.s32 %v70, %v72
    %v74 = vrot.slane %v60, %v73
    %v75 = vcombine.low %v67, %v74
    %v77 = vmul.f32 %v58, %v75
    %v79 = vrot.slane %v77, 4
    %v81 = vadd.f32 %v77, %v79
    %v83 = vrot.slane %v81, 2
    %v85 = vadd.f32 %v81, %v83
    %86 = vrot.lane.b32.xlu0 %v85, 32
    %v87 = vpop.permute.xlu0 %86
    %v88 = vadd.f32 %v85, %v87
    %89 = vrot.lane.b32.xlu0 %v88, 64
    %v90 = vpop.permute.xlu0 %89
    %v91 = vadd.f32 %v88, %v90
    %v93 = vlaneseq
    %v94 = vshrl.u32 %v93, 7
    %v95 = vsub.s32 0, %v94
    %v96 = vrot.slane %v57, %v95
    %v98 = vadd.f32 %v91, %v96
    %vm99 = vcmask 254976
    %100 = vst.msk [vmem:[#allocation7] sm:$0x3] %vm99, %v98
    // Predicated region
    $region22: #{tpu_custom_call.1} parent=1 // pred_check
      _
    $region23: #{tpu_custom_call.1} parent=1 // pred_check_branch
      %102 = sbr.rel (0) target = $region25
    $region24: #{tpu_custom_call.1} parent=1 // pred_region
      %s104 = ssub.s32 32, 32
      %105 = vsyncadd [#allocation4], %s104
      %s107 = sshll.u32 [#allocation7], 4
      %s108 = int_to_ptr.vmem [resolvable:$true] %s107
      %110 = dma.vmem_to_hbm [thread:$0]  %s108, 32, %s3, [#allocation4]
    $region25: #{tpu_custom_call.1} parent=1 // pred_fallthru
      _
    // Predicated region
    $region26: #{tpu_custom_call.1} parent=1 // pred_check
      _
    $region27: #{tpu_custom_call.1} parent=1 // pred_check_branch
      %112 = sbr.rel (0) target = $region29
    $region28: #{tpu_custom_call.1} parent=1 // pred_region
      %113 = dma.done [#allocation4], 32
    $region29: #{tpu_custom_call.1} parent=1 // pred_fallthru
      _
    %114 = vsyncpa [#allocation3], 1
    %115 = vsyncpa [#allocation6], 1
    %116 = vsyncpa [#allocation4], 1

</llo_original>
